<compile_context>
chip_gen: v6e
topology: v6e:2x2x1
jax: 0.10.0
libtpu: 0.0.40
codegen_flags: <defaults>
</compile_context>

<pallas_src>
import jax
import jax.numpy as jnp
from jax.experimental import pallas as pl
from jax.experimental.pallas import tpu as pltpu

LANES = 128
SUBLANES = 8


def _round_up(x, m):
    return ((x + m - 1) // m) * m


def _linear_sigmoid_kernel(params_ref, xT_ref, o_ref):
    # params_ref: (3,) f32 in SMEM -> [w0, w1, b], read on the scalar path.
    # xT_ref:     (2, block_rows, 128) VMEM block, batch dense on (sublane, lane).
    # o_ref:      (block_rows, 128) VMEM block, dense unmasked stores.
    w0 = params_ref[0]
    w1 = params_ref[1]
    b = params_ref[2]
    x0 = xT_ref[0].astype(jnp.float32)          # (block_rows, 128)
    x1 = xT_ref[1].astype(jnp.float32)          # (block_rows, 128)
    y = x0 * w0 + x1 * w1 + b                   # pure VPU FMA, no MXU
    # sigmoid(y) = 1 / (1 + exp(-y)); exp + approx reciprocal both go to the
    # EUP slot, which is free slack under the DMA-bound roofline.
    o_ref[...] = pl.reciprocal(1.0 + jnp.exp(-y), approx=True).astype(o_ref.dtype)


def net_forward_pallas(x, weight, bias, *, max_block_rows=2048):
    """x: (N, 2); weight: (1, 2) (PyTorch Linear layout); bias: (1,)."""
    n, in_f = x.shape
    out_f, in_f_w = weight.shape
    assert in_f == 2 and in_f_w == 2 and out_f == 1

    # 3 parameters as 32-bit scalars in SMEM: no padded VMEM tiles, no extra
    # double-buffered DMA streams for the weights/bias.
    params = jnp.concatenate(
        [weight.reshape(-1), bias.reshape(-1)]).astype(jnp.float32)      # (3,)

    # Dense (sublane, lane) layout: 128 batch elements per lane row.
    n_blocks = pl.cdiv(n, LANES)

    # Rows of 128 lanes per grid step (multiple of 8 sublanes).
    #   max_block_rows=2048 -> 256K elements/block, ~6 MiB double-buffered:
    #   fits v5e (16 MiB), v6e/v7x (32 MiB) scoped VMEM with headroom.
    # Keep >= 2 grid steps when possible so v7x can use both TensorCores.
    if n_blocks <= SUBLANES:
        block_rows = SUBLANES
    else:
        block_rows = min(max_block_rows,
                         _round_up(pl.cdiv(n_blocks, 2), SUBLANES))
    n_blocks_pad = _round_up(n_blocks, block_rows)
    n_pad = n_blocks_pad * LANES
    grid = (n_blocks_pad // block_rows,)

    # One wrapper-side pass: transpose + pad + free row-major reshape into the
    # dense (2, n_blocks_pad, 128) layout the kernel consumes.
    # TODO(synk): fuse this layout change into the upstream producer; it is an
    # extra HBM round trip on an otherwise memory-bound op.
    xT = (jnp.zeros((in_f, n_pad), x.dtype)
          .at[:, :n].set(x.T)
          .reshape(in_f, n_blocks_pad, LANES))

    in_block_bytes = in_f * block_rows * LANES * 4
    out_block_bytes = block_rows * LANES * 4
    vmem_limit = 2 * (in_block_bytes + out_block_bytes) + (4 << 20)

    out = pl.pallas_call(
        _linear_sigmoid_kernel,
        out_shape=jax.ShapeDtypeStruct((n_blocks_pad, LANES), x.dtype),
        grid_spec=pltpu.PrefetchScalarGridSpec(
            num_scalar_prefetch=0,
            grid=grid,
            in_specs=[
                # [w0, w1, b] live in SMEM, passed whole each grid step.
                pl.BlockSpec(memory_space=pltpu.MemorySpace.SMEM),
                # (2, block_rows, 128) dense tile of the transposed input,
                # double-buffered by the BlockSpec pipeline.
                pl.BlockSpec((in_f, block_rows, LANES), lambda i: (0, i, 0)),
            ],
            out_specs=pl.BlockSpec((block_rows, LANES), lambda i: (i, 0)),
        ),
        compiler_params=pltpu.CompilerParams(
            # Batch axis is embarrassingly parallel (no reduction); lets the
            # grid shard across both TensorCores on v7x.
            dimension_semantics=("parallel",),
            vmem_limit_bytes=int(vmem_limit),
        ),
        cost_estimate=pl.CostEstimate(
            flops=4 * n, transcendentals=n, bytes_accessed=12 * n),
    )(params, xT)

    # Padded lanes hold sigmoid(b); slice them off.
    return out.reshape(n_pad)[:n].reshape(n, out_f)


def net_forward(x, weight, bias, *, min_pallas_batch=262144):
    """Dispatcher: below ~256K rows the extra transpose pass plus pallas_call
    launch/DMA setup lose to XLA's single fused sigmoid(x @ W^T + b)."""
    if x.shape[0] < min_pallas_batch:
        return jax.nn.sigmoid(x @ weight.T + bias)
    return net_forward_pallas(x, weight, bias)


if __name__ == "__main__":
    key = jax.random.PRNGKey(0)
    kx, kw, kb = jax.random.split(key, 3)

    in_features, out_features = 2, 1
    weight = jax.random.normal(kw, (out_features, in_features), dtype=jnp.float32) * 0.5
    bias = jax.random.normal(kb, (out_features,), dtype=jnp.float32) * 0.1

    def ref(xv):
        return jax.nn.sigmoid(xv @ weight.T + bias)

    # Tolerance covers the EUP approximate reciprocal used inside sigmoid.
    tol = dict(atol=5e-3, rtol=5e-3)

    # 1) Exercise the Pallas kernel path (dense (rows, 128) layout).
    batch = 256
    x = jax.random.normal(kx, (batch, in_features), dtype=jnp.float32)
    out = net_forward_pallas(x, weight, bias)
    jax.block_until_ready(out)
    assert out.shape == (batch, out_features)
    assert jnp.allclose(out, ref(x), **tol)

    # 2) Pallas path with a batch that is not a multiple of 128 (padding path)
    #    and more than one grid step (n_blocks=16 -> block_rows=8, grid=(2,)).
    batch2 = 2000
    x_odd = jax.random.normal(kx, (batch2, in_features), dtype=jnp.float32)
    out_odd = net_forward_pallas(x_odd, weight, bias)
    jax.block_until_ready(out_odd)
    assert out_odd.shape == (batch2, out_features)
    assert jnp.allclose(out_odd, ref(x_odd), **tol)

    # 3) Tiny batch: dispatcher falls back to fused XLA (no pallas overhead).
    x_small = jax.random.normal(kx, (8, in_features), dtype=jnp.float32)
    out_small = net_forward(x_small, weight, bias)
    jax.block_until_ready(out_small)
    assert jnp.allclose(out_small, ref(x_small), atol=1e-5, rtol=1e-5)

    print("KERNEL_OK")
</pallas_src>

<mosaic_0001>
module attributes {stable_mosaic.version = 11 : i64} {
  func.func @_linear_sigmoid_kernel(%arg0: i32, %arg1: memref<3xf32, #tpu.memory_space<smem>>, %arg2: memref<2x8x128xf32, #tpu.memory_space<vmem>>, %arg3: memref<8x128xf32, #tpu.memory_space<vmem>>) attributes {dimension_semantics = [#tpu.dimension_semantics<parallel>], iteration_bounds = array<i64: 1>, scalar_prefetch = 0 : i64, scratch_operands = 0 : i64, tpu.core_type = #tpu.core_type<tc>, window_params = [{transform_indices = @transform_0, window_bounds = array<i64: 3>}, {transform_indices = @transform_1, window_bounds = array<i64: 2, 8, 128>}, {transform_indices = @transform_2, window_bounds = array<i64: 8, 128>}]} {
    %c0 = arith.constant 0 : index
    %0 = memref.load %arg1[%c0] : memref<3xf32, #tpu.memory_space<smem>>
    %c1 = arith.constant 1 : index
    %1 = memref.load %arg1[%c1] : memref<3xf32, #tpu.memory_space<smem>>
    %c2 = arith.constant 2 : index
    %2 = memref.load %arg1[%c2] : memref<3xf32, #tpu.memory_space<smem>>
    %c0_0 = arith.constant 0 : index
    %c0_1 = arith.constant 0 : index
    %c0_2 = arith.constant 0 : index
    %3 = vector.load %arg2[%c0_0, %c0_1, %c0_2] : memref<2x8x128xf32, #tpu.memory_space<vmem>>, vector<1x8x128xf32>
    %4 = vector.shape_cast %3 : vector<1x8x128xf32> to vector<8x128xf32>
    %c1_3 = arith.constant 1 : index
    %c0_4 = arith.constant 0 : index
    %c0_5 = arith.constant 0 : index
    %5 = vector.load %arg2[%c1_3, %c0_4, %c0_5] : memref<2x8x128xf32, #tpu.memory_space<vmem>>, vector<1x8x128xf32>
    %6 = vector.shape_cast %5 : vector<1x8x128xf32> to vector<8x128xf32>
    %7 = vector.broadcast %0 : f32 to vector<8x128xf32>
    %8 = arith.mulf %4, %7 : vector<8x128xf32>
    %9 = vector.broadcast %1 : f32 to vector<8x128xf32>
    %10 = arith.mulf %6, %9 : vector<8x128xf32>
    %11 = arith.addf %8, %10 : vector<8x128xf32>
    %12 = vector.broadcast %2 : f32 to vector<8x128xf32>
    %13 = arith.addf %11, %12 : vector<8x128xf32>
    %cst = arith.constant 0.000000e+00 : f32
    %14 = vector.broadcast %cst : f32 to vector<8x128xf32>
    %15 = arith.subf %14, %13 : vector<8x128xf32>
    %16 = math.exp %15 : vector<8x128xf32>
    %cst_6 = arith.constant 1.000000e+00 : f32
    %17 = vector.broadcast %cst_6 : f32 to vector<8x128xf32>
    %18 = arith.addf %17, %16 : vector<8x128xf32>
    %19 = tpu.reciprocal %18 {approx = true} : vector<8x128xf32> -> vector<8x128xf32>
    %c0_7 = arith.constant 0 : index
    %c0_8 = arith.constant 0 : index
    %20 = vector.load %arg3[%c0_7, %c0_8] : memref<8x128xf32, #tpu.memory_space<vmem>>, vector<8x128xf32>
    tpu.vector_store %arg3[%c0_7, %c0_8], %19 {strides = array<i32>} : memref<8x128xf32, #tpu.memory_space<vmem>>, vector<8x128xf32>,
    return
  }
  func.func @transform_0(%arg0: i32) -> i32 {
    %c0_i32 = arith.constant 0 : i32
    %c0_i32_0 = arith.constant 0 : i32
    return %c0_i32 : i32
  }
  func.func @transform_1(%arg0: i32) -> (i32, i32, i32) {
    %c0_i32 = arith.constant 0 : i32
    %c0_i32_0 = arith.constant 0 : i32
    %c0_i32_1 = arith.constant 0 : i32
    return %c0_i32, %arg0, %c0_i32_0 : i32, i32, i32
  }
  func.func @transform_2(%arg0: i32) -> (i32, i32) {
    %c0_i32 = arith.constant 0 : i32
    %c0_i32_0 = arith.constant 0 : i32
    return %arg0, %c0_i32 : i32, i32
  }
}

</mosaic_0001>

<llo_original>
// kernel: tpu_custom_call.1
$region0: #{tpu_custom_call.1}
  #allocation0 [shape = 'u32[]', space=smem, size = 0x4, offset = 0x4, fixed_abs, tag = 'smem constant byte address 0x4 - core index']
  #allocation1 [shape = 'u32[144,128]{1,0:T(1,128)}', space=vmem, size = 0x12000, scoped, tag = 'internal scratch']
  %s0 = inlined_call_operand.hbm [shape: f32[3], index: 0, kind: input, shape index: {}]
  %s1 = inlined_call_operand.hbm [shape: f32[2,8,128], index: 1, kind: input, shape index: {}]
  %s2 = inlined_call_operand.hbm [shape: f32[8,128], index: 2, kind: output, shape index: {}]
  %s3 = sld [smem:[#allocation0]]
  $region26: #{tpu_custom_call.1} parent=0
    _
  %s5 = ssub.s32 1, %s3
  %s6 = scalar_select 0, %s5, %s3
  $region1: #{tpu_custom_call.1} parent=0
    #allocation2 [shape = 'u8[512]{0}', space=smem, size = 0x200, scoped, tag = 'input window, operand 0, single buffered']
    #allocation3 [shape = 's32[1]{0}', space=sflag, size = 0x4, scoped, tag = 'scoped memory for tpu_custom_call.1']
    #allocation4 [shape = 's32[1]{0}', space=sflag, size = 0x4, scoped, tag = 'scoped memory for tpu_custom_call.1']
    #allocation5 [shape = 's32[1]{0}', space=sflag, size = 0x4, scoped, tag = 'scoped memory for tpu_custom_call.1']
    #allocation6 [shape = 'u8[8192]{0}', space=vmem, size = 0x2000, scoped, tag = 'input window, operand 1, single buffered']
    #allocation7 [shape = 'u8[4096]{0}', space=vmem, size = 0x1000, scoped, tag = 'output window, operand 0, single buffered']
    %7 = vsyncpa [#allocation5], 0
    %8 = vsyncpa [#allocation3], 0
    %9 = vsyncpa [#allocation4], 0
    // Predicated region
    $region2: #{tpu_custom_call.1} parent=1 // pred_check
      _
    $region3: #{tpu_custom_call.1} parent=1 // pred_check_branch
      %11 = sbr.rel (0) target = $region5
    $region4: #{tpu_custom_call.1} parent=1 // pred_region
      %s13 = ssub.s32 16, 16
      %14 = vsyncadd [#allocation5], %s13
      %17 = dma.hbm_to_smem %s0, 16, [#allocation2], [#allocation5]
    $region5: #{tpu_custom_call.1} parent=1 // pred_fallthru
      _
    // Predicated region
    $region6: #{tpu_custom_call.1} parent=1 // pred_check
      _
    $region7: #{tpu_custom_call.1} parent=1 // pred_check_branch
      %19 = sbr.rel (0) target = $region9
    $region8: #{tpu_custom_call.1} parent=1 // pred_region
      %s21 = ssub.s32 256, 256
      %22 = vsyncadd [#allocation3], %s21
      %s23 = sshll.u32 [#allocation6], 4
      %s24 = int_to_ptr.vmem [resolvable:$true] %s23
      %29 = dma.hbm_to_vmem [thread:$0]  %s1, 256, %s24, [#allocation3], 128, 128, 8
    $region9: #{tpu_custom_call.1} parent=1 // pred_fallthru
      _
    // Predicated region
    $region10: #{tpu_custom_call.1} parent=1 // pred_check
      _
    $region11: #{tpu_custom_call.1} parent=1 // pred_check_branch
      %31 = sbr.rel (0) target = $region13
    $region12: #{tpu_custom_call.1} parent=1 // pred_region
      %32 = dma.done [#allocation5], 16
    $region13: #{tpu_custom_call.1} parent=1 // pred_fallthru
      _
    // Predicated region
    $region14: #{tpu_custom_call.1} parent=1 // pred_check
      _
    $region15: #{tpu_custom_call.1} parent=1 // pred_check_branch
      %34 = sbr.rel (0) target = $region17
    $region16: #{tpu_custom_call.1} parent=1 // pred_region
      %35 = dma.done [#allocation3], 256
    $region17: #{tpu_custom_call.1} parent=1 // pred_fallthru
      _
    %36 = sfence
    %s37 = sld [smem:[#allocation2]]
    %s38 = sld [smem:[#allocation2 + $0x1]]
    %s39 = sld [smem:[#allocation2 + $0x2]]
    %v40 = vld [vmem:[#allocation6] sm:$0xff]
    %s41 = scalar_lea.vmem [#allocation6], 8
    %v42 = vld [vmem:[%s41] sm:$0xff]
    %v43 = vstv %s37
    %v44 = vmul.f32 %v40, %v43
    %v45 = vstv %s38
    %v46 = vmul.f32 %v42, %v45
    %v47 = vadd.f32 %v44, %v46
    %v48 = vstv %s39
    %v49 = vadd.f32 %v47, %v48
    %v50 = vsub.f32 0.0, %v49
    %v51 = vmul.f32 %v50, 1.442695
    %v52 = vpow.pop %v51
    %v53 = vadd.f32 %v52, 1.0
    %v54 = vrcp.pop %v53
    %55 = vst [vmem:[#allocation7] sm:$0xff] %v54
    // Predicated region
    $region18: #{tpu_custom_call.1} parent=1 // pred_check
      _
    $region19: #{tpu_custom_call.1} parent=1 // pred_check_branch
      %57 = sbr.rel (0) target = $region21
    $region20: #{tpu_custom_call.1} parent=1 // pred_region
      %s59 = ssub.s32 128, 128
      %60 = vsyncadd [#allocation4], %s59
      %s62 = sshll.u32 [#allocation7], 4
      %s63 = int_to_ptr.vmem [resolvable:$true] %s62
      %65 = dma.vmem_to_hbm [thread:$0]  %s63, 128, %s2, [#allocation4]
    $region21: #{tpu_custom_call.1} parent=1 // pred_fallthru
      _
    // Predicated region
    $region22: #{tpu_custom_call.1} parent=1 // pred_check
      _
    $region23: #{tpu_custom_call.1} parent=1 // pred_check_branch
      %67 = sbr.rel (0) target = $region25
    $region24: #{tpu_custom_call.1} parent=1 // pred_region
      %68 = dma.done [#allocation4], 128
    $region25: #{tpu_custom_call.1} parent=1 // pred_fallthru
      _
    %69 = vsyncpa [#allocation3], 1
    %70 = vsyncpa [#allocation4], 1
    %71 = vsyncpa [#allocation5], 1

</llo_original>
